<compile_context>
chip_gen: v5e
topology: v5e:2x2
jax: 0.10.0
libtpu: 0.0.40
codegen_flags: <defaults>
</compile_context>

<pallas_src>
from typing import List

import jax
import jax.numpy as jnp
from jax.experimental import pallas as pl
from jax.experimental.pallas import tpu as pltpu


# ----------------------------- helpers ---------------------------------------

def _round_up(x: int, m: int) -> int:
    return ((x + m - 1) // m) * m


def _tpu_hw_info():
    """Return (per-core VMEM bytes, MXU tile width) for the current backend."""
    kind = ""
    try:
        kind = jax.devices()[0].device_kind.lower()
    except Exception:
        pass

    vmem = None
    try:
        vmem = int(pltpu.get_tpu_info().vmem_capacity_bytes)
    except Exception:
        vmem = None
    if vmem is None or vmem <= 0:
        vmem = (64 << 20) if "7" in kind else (128 << 20)
    if "7" in kind:                       # v7x: 64 MiB per TensorCore, be safe
        vmem = min(vmem, 64 << 20)

    # 128-wide MXU on v2..v5 class chips, 256-wide on v6e / v7x.
    older = any(t in kind for t in ("v2", "v3", "v4", "v5"))
    mxu = 128 if older else 256
    return vmem, mxu


def _pad_dim(d: int, mxu: int) -> int:
    # Full MXU tiles on 256-wide MXUs for non-tiny dims; 128 otherwise.
    if mxu >= 256 and d >= 192:
        return _round_up(d, 256)
    return _round_up(d, 128)


def _const_param_spec(shape):
    """Constant-index (VMEM-resident) BlockSpec; single-buffered when supported."""
    index_map = lambda i: (0, 0)
    if hasattr(pl, "Buffered"):
        try:
            return pl.BlockSpec(shape, index_map, pipeline_mode=pl.Buffered(1))
        except TypeError:
            pass
    return pl.BlockSpec(shape, index_map)


# ----------------------------- kernel -----------------------------------------

def _make_group_kernel(num_layers: int, relu_last: bool):
    """Fused forward for one batch tile over a group of Linear(+ReLU) layers.

    Ref order: x, (w0, b0), (w1, b1), ..., out
    """

    def kernel(*refs):
        x_ref = refs[0]
        out_ref = refs[-1]
        param_refs = refs[1:-1]

        h = x_ref[...]                                    # bf16 (TB, D_in)
        for i in range(num_layers):
            w = param_refs[2 * i][...]                    # bf16 (D_in, D_out)
            b = param_refs[2 * i + 1][...]                # f32  (1, D_out)
            acc = jnp.dot(h, w, preferred_element_type=jnp.float32) + b
            is_last = i == num_layers - 1
            if (not is_last) or relu_last:
                # ReLU after the bf16 cast: numerically identical, bf16 VPU path.
                h = jnp.maximum(acc.astype(jnp.bfloat16), 0)
                if is_last:
                    out_ref[...] = h.astype(out_ref.dtype)
            else:
                out_ref[...] = acc.astype(out_ref.dtype)

    return kernel


# ------------------------- parameter preparation ------------------------------

def prepare_mlp_params(weights, biases):
    """Pad/cast parameters ONCE (hoisted out of the per-call path) and plan
    layer groups that fit the generation-aware VMEM budget.

    weights: list of (in_dim, out_dim) f32 arrays (transposed vs PyTorch layout)
    biases:  list of (out_dim,) or (1, out_dim) f32 arrays
    """
    assert len(weights) == len(biases)
    num_layers = len(weights)

    vmem_capacity, mxu = _tpu_hw_info()
    vmem_budget = int(vmem_capacity * 0.8)

    dims = [weights[0].shape[0]] + [w.shape[1] for w in weights]
    dims_pad = [_pad_dim(d, mxu) for d in dims]

    wp_list, bp_list = [], []
    for li, (w, b) in enumerate(zip(weights, biases)):
        d_in, d_out = dims_pad[li], dims_pad[li + 1]
        wp = jnp.zeros((d_in, d_out), jnp.bfloat16)
        wp = wp.at[:w.shape[0], :w.shape[1]].set(w.astype(jnp.bfloat16))
        bp = jnp.zeros((1, d_out), jnp.float32)
        bp = bp.at[0, :w.shape[1]].set(jnp.asarray(b, jnp.float32).reshape(-1))
        wp_list.append(wp)
        bp_list.append(bp)

    # Per-layer resident parameter footprint (single-buffered: Buffered(1)).
    layer_bytes = [dims_pad[i] * dims_pad[i + 1] * 2 + dims_pad[i + 1] * 4
                   for i in range(num_layers)]

    # Reserve room for activations at the minimum batch tile (tb = 16).
    widest = max(dims_pad)
    act_reserve = 2 * 16 * widest * 2 + 2 * 16 * widest * 4 + 3 * 16 * widest * 4
    param_budget = max(1, vmem_budget - act_reserve)

    groups, cur, cur_bytes = [], [], 0
    for i, lb in enumerate(layer_bytes):
        if cur and cur_bytes + lb > param_budget:
            groups.append(cur)
            cur, cur_bytes = [], 0
        cur.append(i)
        cur_bytes += lb
    groups.append(cur)
    group_param_bytes = [sum(layer_bytes[i] for i in g) for g in groups]

    return dict(
        weights=wp_list, biases=bp_list,
        dims=dims, dims_pad=dims_pad,
        input_dim=dims[0], output_dim=dims[-1],
        vmem_budget=vmem_budget,
        groups=groups, group_param_bytes=group_param_bytes,
    )


# ------------------------------ forward ---------------------------------------

def _pick_batch_tile(batch, groups, group_param_bytes, dims_pad,
                     vmem_budget, max_batch_tile):
    batch_r = _round_up(batch, 16)
    tb = max(16, min(_round_up(max_batch_tile, 16), batch_r))
    # >= 2 grid steps when the batch permits, so v7x's two TCs both get work.
    if batch_r >= 32:
        tb = min(tb, _round_up(batch_r // 2, 16))

    for g, pbytes in zip(groups, group_param_bytes):
        d_in = dims_pad[g[0]]
        d_out = dims_pad[g[-1] + 1]
        widest = max(dims_pad[g[0]:g[-1] + 2])

        def act_bytes(t):
            return (2 * t * d_in * 2          # x tile, double-buffered bf16
                    + 2 * t * d_out * 4       # out tile (worst case f32)
                    + 3 * t * widest * 4)     # in-flight f32 activations

        while tb > 16 and pbytes + act_bytes(tb) > vmem_budget:
            tb = max(16, _round_up(tb // 2, 16))
    return tb


def _run_group(h, ws, bs, *, relu_last, out_dtype, tb, vmem_budget):
    batch_pad, d_in = h.shape
    d_out = ws[-1].shape[1]
    n = len(ws)

    operands = [h]
    in_specs = [pl.BlockSpec((tb, d_in), lambda i: (i, 0))]
    for w, b in zip(ws, bs):
        operands += [w, b]
        in_specs += [_const_param_spec(w.shape), _const_param_spec(b.shape)]

    flops = 2 * sum(batch_pad * w.shape[0] * w.shape[1] for w in ws)
    bytes_accessed = (sum(int(o.size) * o.dtype.itemsize for o in operands)
                      + batch_pad * d_out * jnp.dtype(out_dtype).itemsize)

    return pl.pallas_call(
        _make_group_kernel(n, relu_last),
        out_shape=jax.ShapeDtypeStruct((batch_pad, d_out), out_dtype),
        grid=(batch_pad // tb,),
        in_specs=in_specs,
        out_specs=pl.BlockSpec((tb, d_out), lambda i: (i, 0)),
        compiler_params=pltpu.CompilerParams(
            dimension_semantics=("parallel",),
            vmem_limit_bytes=vmem_budget),
        cost_estimate=pl.CostEstimate(flops=flops, transcendentals=0,
                                      bytes_accessed=bytes_accessed),
    )(*operands)


def dense_relu_network_forward(x, params, *, max_batch_tile=512):
    """MLP forward. `params` comes from prepare_mlp_params (padded, cached).

    x: (batch, input_dim) float32 -> (batch, output_dim) float32
    """
    weights = params["weights"]
    biases = params["biases"]
    dims_pad = params["dims_pad"]
    groups = params["groups"]
    group_param_bytes = params["group_param_bytes"]
    vmem_budget = params["vmem_budget"]
    input_dim = params["input_dim"]
    output_dim = params["output_dim"]

    batch = x.shape[0]
    tb = _pick_batch_tile(batch, groups, group_param_bytes, dims_pad,
                          vmem_budget, max_batch_tile)
    batch_pad = _round_up(max(batch, tb), tb)

    # Zero-pad x (zero padding keeps the valid output slice numerically exact).
    xp = jnp.zeros((batch_pad, dims_pad[0]), jnp.bfloat16)
    xp = xp.at[:batch, :input_dim].set(x.astype(jnp.bfloat16))

    h = xp
    for gi, group in enumerate(groups):
        is_final = gi == len(groups) - 1
        h = _run_group(
            h,
            [weights[i] for i in group],
            [biases[i] for i in group],
            relu_last=not is_final,                       # group boundary is mid-net
            out_dtype=jnp.float32 if is_final else jnp.bfloat16,
            tb=tb, vmem_budget=vmem_budget)

    return h[:batch, :output_dim]


# --------------------------- init & reference ---------------------------------

def init_params(key, input_dim: int, output_dim: int, layers: List[int]):
    """Parameter init matching the nn.Module's layer shapes.

    PyTorch nn.Linear(in, out) has weight (out, in), bias (out,);
    we store weight transposed as (in, out) and bias as (1, out).
    """
    dims_in = [input_dim] + layers[:-1] + [layers[-1]]
    dims_out = list(layers) + [output_dim]

    weights, biases = [], []
    for d_in, d_out in zip(dims_in, dims_out):
        key, kw, kb = jax.random.split(key, 3)
        bound = 1.0 / jnp.sqrt(jnp.float32(d_in))
        w = jax.random.uniform(kw, (d_in, d_out), jnp.float32, -bound, bound)
        b = jax.random.uniform(kb, (1, d_out), jnp.float32, -bound, bound)
        weights.append(w)
        biases.append(b)
    return weights, biases


def reference_forward(x, weights, biases):
    """Plain-JAX f32 reference for correctness check."""
    h = x
    n = len(weights)
    for i, (w, b) in enumerate(zip(weights, biases)):
        h = h @ w + b
        if i < n - 1:
            h = jnp.maximum(h, 0.0)
    return h


# ----------------------------------- main --------------------------------------

if __name__ == "__main__":
    # Small shapes consistent with the module's forward: x is (batch, input_dim).
    batch = 2
    input_dim = 4
    layers = [32, 32]
    output_dim = 3
    dropout = 0.25  # inference: identity

    key = jax.random.PRNGKey(0)
    key, kx = jax.random.split(key)
    x = jax.random.normal(kx, (batch, input_dim), jnp.float32)

    weights, biases = init_params(key, input_dim, output_dim, layers)

    # Pad/cast parameters once (cached); jit the whole forward so the x pad/cast
    # and the pallas calls fuse into one compiled executable.
    params = prepare_mlp_params(weights, biases)
    forward = jax.jit(lambda xx: dense_relu_network_forward(xx, params))

    out = forward(x)
    out = jax.block_until_ready(out)

    ref = reference_forward(x, weights, biases)
    assert out.shape == (batch, output_dim)
    # bf16 matmul inputs with f32 accumulation -> loosened tolerance vs f32 ref.
    assert jnp.allclose(out, ref, atol=5e-2, rtol=5e-2), "mismatch vs reference"

    print("KERNEL_OK")
</pallas_src>

<mosaic_0001>
module attributes {stable_mosaic.version = 11 : i64} {
  func.func @kernel(%arg0: i32, %arg1: memref<16x128xbf16, #tpu.memory_space<vmem>>, %arg2: memref<128x128xbf16, #tpu.memory_space<vmem>>, %arg3: memref<1x128xf32, #tpu.memory_space<vmem>>, %arg4: memref<128x128xbf16, #tpu.memory_space<vmem>>, %arg5: memref<1x128xf32, #tpu.memory_space<vmem>>, %arg6: memref<128x128xbf16, #tpu.memory_space<vmem>>, %arg7: memref<1x128xf32, #tpu.memory_space<vmem>>, %arg8: memref<16x128xf32, #tpu.memory_space<vmem>>) attributes {dimension_semantics = [#tpu.dimension_semantics<parallel>], iteration_bounds = array<i64: 1>, scalar_prefetch = 0 : i64, scratch_operands = 0 : i64, tpu.core_type = #tpu.core_type<tc>, window_params = [{transform_indices = @transform_0, window_bounds = array<i64: 16, 128>}, {pipeline_mode = #tpu.pipeline_mode<synchronous>, transform_indices = @transform_1, window_bounds = array<i64: 128, 128>}, {pipeline_mode = #tpu.pipeline_mode<synchronous>, transform_indices = @transform_2, window_bounds = array<i64: 1, 128>}, {pipeline_mode = #tpu.pipeline_mode<synchronous>, transform_indices = @transform_3, window_bounds = array<i64: 128, 128>}, {pipeline_mode = #tpu.pipeline_mode<synchronous>, transform_indices = @transform_4, window_bounds = array<i64: 1, 128>}, {pipeline_mode = #tpu.pipeline_mode<synchronous>, transform_indices = @transform_5, window_bounds = array<i64: 128, 128>}, {pipeline_mode = #tpu.pipeline_mode<synchronous>, transform_indices = @transform_6, window_bounds = array<i64: 1, 128>}, {transform_indices = @transform_7, window_bounds = array<i64: 16, 128>}]} {
    %c0 = arith.constant 0 : index
    %c0_0 = arith.constant 0 : index
    %0 = vector.load %arg1[%c0, %c0_0] : memref<16x128xbf16, #tpu.memory_space<vmem>>, vector<16x128xbf16>
    %c0_1 = arith.constant 0 : index
    %c0_2 = arith.constant 0 : index
    %1 = vector.load %arg2[%c0_1, %c0_2] : memref<128x128xbf16, #tpu.memory_space<vmem>>, vector<128x128xbf16>
    %c0_3 = arith.constant 0 : index
    %c0_4 = arith.constant 0 : index
    %2 = vector.load %arg3[%c0_3, %c0_4] : memref<1x128xf32, #tpu.memory_space<vmem>>, vector<1x128xf32>
    %cst = arith.constant dense<0.000000e+00> : vector<16x128xf32>
    %3 = tpu.matmul %0, %1, %cst {dimension_numbers = #tpu.dot_dimension_numbers<[1], [0], [0], [1], [0, 0, 1, 1], [], []>} : vector<16x128xbf16>, vector<128x128xbf16>, vector<16x128xf32> -> vector<16x128xf32>
    %4 = vector.broadcast %2 : vector<1x128xf32> to vector<16x128xf32>
    %5 = arith.addf %3, %4 : vector<16x128xf32>
    %6 = arith.truncf %5 : vector<16x128xf32> to vector<16x128xbf16>
    %cst_5 = arith.constant 0.000000e+00 : bf16
    %7 = vector.broadcast %cst_5 : bf16 to vector<16x128xbf16>
    %8 = arith.maximumf %6, %7 : vector<16x128xbf16>
    %c0_6 = arith.constant 0 : index
    %c0_7 = arith.constant 0 : index
    %9 = vector.load %arg4[%c0_6, %c0_7] : memref<128x128xbf16, #tpu.memory_space<vmem>>, vector<128x128xbf16>
    %c0_8 = arith.constant 0 : index
    %c0_9 = arith.constant 0 : index
    %10 = vector.load %arg5[%c0_8, %c0_9] : memref<1x128xf32, #tpu.memory_space<vmem>>, vector<1x128xf32>
    %cst_10 = arith.constant dense<0.000000e+00> : vector<16x128xf32>
    %11 = tpu.matmul %8, %9, %cst_10 {dimension_numbers = #tpu.dot_dimension_numbers<[1], [0], [0], [1], [0, 0, 1, 1], [], []>} : vector<16x128xbf16>, vector<128x128xbf16>, vector<16x128xf32> -> vector<16x128xf32>
    %12 = vector.broadcast %10 : vector<1x128xf32> to vector<16x128xf32>
    %13 = arith.addf %11, %12 : vector<16x128xf32>
    %14 = arith.truncf %13 : vector<16x128xf32> to vector<16x128xbf16>
    %cst_11 = arith.constant 0.000000e+00 : bf16
    %15 = vector.broadcast %cst_11 : bf16 to vector<16x128xbf16>
    %16 = arith.maximumf %14, %15 : vector<16x128xbf16>
    %c0_12 = arith.constant 0 : index
    %c0_13 = arith.constant 0 : index
    %17 = vector.load %arg6[%c0_12, %c0_13] : memref<128x128xbf16, #tpu.memory_space<vmem>>, vector<128x128xbf16>
    %c0_14 = arith.constant 0 : index
    %c0_15 = arith.constant 0 : index
    %18 = vector.load %arg7[%c0_14, %c0_15] : memref<1x128xf32, #tpu.memory_space<vmem>>, vector<1x128xf32>
    %cst_16 = arith.constant dense<0.000000e+00> : vector<16x128xf32>
    %19 = tpu.matmul %16, %17, %cst_16 {dimension_numbers = #tpu.dot_dimension_numbers<[1], [0], [0], [1], [0, 0, 1, 1], [], []>} : vector<16x128xbf16>, vector<128x128xbf16>, vector<16x128xf32> -> vector<16x128xf32>
    %20 = vector.broadcast %18 : vector<1x128xf32> to vector<16x128xf32>
    %21 = arith.addf %19, %20 : vector<16x128xf32>
    %c0_17 = arith.constant 0 : index
    %c0_18 = arith.constant 0 : index
    %22 = vector.load %arg8[%c0_17, %c0_18] : memref<16x128xf32, #tpu.memory_space<vmem>>, vector<16x128xf32>
    tpu.vector_store %arg8[%c0_17, %c0_18], %21 {strides = array<i32>} : memref<16x128xf32, #tpu.memory_space<vmem>>, vector<16x128xf32>,
    return
  }
  func.func @transform_0(%arg0: i32) -> (i32, i32) {
    %c0_i32 = arith.constant 0 : i32
    %c0_i32_0 = arith.constant 0 : i32
    return %arg0, %c0_i32 : i32, i32
  }
  func.func @transform_1(%arg0: i32) -> (i32, i32) {
    %c0_i32 = arith.constant 0 : i32
    %c0_i32_0 = arith.constant 0 : i32
    %c0_i32_1 = arith.constant 0 : i32
    return %c0_i32, %c0_i32_0 : i32, i32
  }
  func.func @transform_2(%arg0: i32) -> (i32, i32) {
    %c0_i32 = arith.constant 0 : i32
    %c0_i32_0 = arith.constant 0 : i32
    %c0_i32_1 = arith.constant 0 : i32
    return %c0_i32, %c0_i32_0 : i32, i32
  }
  func.func @transform_3(%arg0: i32) -> (i32, i32) {
    %c0_i32 = arith.constant 0 : i32
    %c0_i32_0 = arith.constant 0 : i32
    %c0_i32_1 = arith.constant 0 : i32
    return %c0_i32, %c0_i32_0 : i32, i32
  }
  func.func @transform_4(%arg0: i32) -> (i32, i32) {
    %c0_i32 = arith.constant 0 : i32
    %c0_i32_0 = arith.constant 0 : i32
    %c0_i32_1 = arith.constant 0 : i32
    return %c0_i32, %c0_i32_0 : i32, i32
  }
  func.func @transform_5(%arg0: i32) -> (i32, i32) {
    %c0_i32 = arith.constant 0 : i32
    %c0_i32_0 = arith.constant 0 : i32
    %c0_i32_1 = arith.constant 0 : i32
    return %c0_i32, %c0_i32_0 : i32, i32
  }
  func.func @transform_6(%arg0: i32) -> (i32, i32) {
    %c0_i32 = arith.constant 0 : i32
    %c0_i32_0 = arith.constant 0 : i32
    %c0_i32_1 = arith.constant 0 : i32
    return %c0_i32, %c0_i32_0 : i32, i32
  }
  func.func @transform_7(%arg0: i32) -> (i32, i32) {
    %c0_i32 = arith.constant 0 : i32
    %c0_i32_0 = arith.constant 0 : i32
    return %arg0, %c0_i32 : i32, i32
  }
}

</mosaic_0001>

<llo_original>
// kernel: _lambda_.1
$region0: #{_lambda_.1}
  #allocation0 [shape = 'u32[]', space=smem, size = 0x4, offset = 0x4, fixed_abs, tag = 'smem constant byte address 0x4 - core index']
  #allocation1 [shape = 'u32[72,128]{1,0:T(1,128)}', space=vmem, size = 0x9000, scoped, tag = 'internal scratch']
  %s0 = inlined_call_operand.vmem [shape: bf16[16,128], index: 0, kind: input, shape index: {}]
  %s1 = inlined_call_operand.hbm [shape: bf16[128,128], index: 1, kind: input, shape index: {}]
  %s2 = inlined_call_operand.vmem [shape: f32[1,128], index: 2, kind: input, shape index: {}]
  %s3 = inlined_call_operand.hbm [shape: bf16[128,128], index: 3, kind: input, shape index: {}]
  %s4 = inlined_call_operand.vmem [shape: f32[1,128], index: 4, kind: input, shape index: {}]
  %s5 = inlined_call_operand.hbm [shape: bf16[128,128], index: 5, kind: input, shape index: {}]
  %s6 = inlined_call_operand.vmem [shape: f32[1,128], index: 6, kind: input, shape index: {}]
  %s7 = inlined_call_operand.vmem [shape: f32[16,128], index: 7, kind: output, shape index: {}]
  %s8 = sld [smem:[#allocation0]]
  $region50: #{_lambda_.1} parent=0
    _
  %s10 = ssub.s32 1, %s8
  %s11 = scalar_select 0, %s10, %s8
  $region1: #{_lambda_.1} parent=0
    #allocation2 [shape = 'u8[32768]{0}', space=vmem, size = 0x8000, scoped, tag = 'input window, operand 1, single buffered']
    #allocation3 [shape = 's32[1]{0}', space=sflag, size = 0x4, scoped, tag = 'scoped memory for _lambda_.1']
    #allocation4 [shape = 'u8[32768]{0}', space=vmem, size = 0x8000, scoped, tag = 'input window, operand 3, single buffered']
    #allocation5 [shape = 's32[1]{0}', space=sflag, size = 0x4, scoped, tag = 'scoped memory for _lambda_.1']
    #allocation6 [shape = 'u8[32768]{0}', space=vmem, size = 0x8000, scoped, tag = 'input window, operand 5, single buffered']
    %12 = vsyncpa [#allocation3], 0
    %13 = vsyncpa [#allocation5], 0
    // Predicated region
    $region2: #{_lambda_.1} parent=1 // pred_check
      _
    $region3: #{_lambda_.1} parent=1 // pred_check_branch
      %15 = sbr.rel (0) target = $region5
    $region4: #{_lambda_.1} parent=1 // pred_region
      _
    $region5: #{_lambda_.1} parent=1 // pred_fallthru
      _
    // Predicated region
    $region6: #{_lambda_.1} parent=1 // pred_check
      _
    $region7: #{_lambda_.1} parent=1 // pred_check_branch
      %17 = sbr.rel (0) target = $region9
    $region8: #{_lambda_.1} parent=1 // pred_region
      %19 = vsyncadd [#allocation3], 0
      %s20 = sshll.u32 %s1, 4
      %s21 = int_to_ptr.hbm [resolvable:$true] %s20
      %s22 = sshll.u32 [#allocation2], 4
      %s23 = int_to_ptr.vmem [resolvable:$true] %s22
      %28 = dma.hbm_to_vmem [thread:$0]  %s21, 1024, %s23, [#allocation3], 64, 64, 4
    $region9: #{_lambda_.1} parent=1 // pred_fallthru
      _
    // Predicated region
    $region10: #{_lambda_.1} parent=1 // pred_check
      _
    $region11: #{_lambda_.1} parent=1 // pred_check_branch
      %30 = sbr.rel (0) target = $region13
    $region12: #{_lambda_.1} parent=1 // pred_region
      _
    $region13: #{_lambda_.1} parent=1 // pred_fallthru
      _
    // Predicated region
    $region14: #{_lambda_.1} parent=1 // pred_check
      _
    $region15: #{_lambda_.1} parent=1 // pred_check_branch
      %32 = sbr.rel (0) target = $region17
    $region16: #{_lambda_.1} parent=1 // pred_region
      %34 = vsyncadd [#allocation5], 0
      %s35 = sshll.u32 %s3, 4
      %s36 = int_to_ptr.hbm [resolvable:$true] %s35
      %s37 = sshll.u32 [#allocation4], 4
      %s38 = int_to_ptr.vmem [resolvable:$true] %s37
      %43 = dma.hbm_to_vmem [thread:$0]  %s36, 1024, %s38, [#allocation5], 64, 64, 4
    $region17: #{_lambda_.1} parent=1 // pred_fallthru
      _
    // Predicated region
    $region18: #{_lambda_.1} parent=1 // pred_check
      _
    $region19: #{_lambda_.1} parent=1 // pred_check_branch
      %45 = sbr.rel (0) target = $region21
    $region20: #{_lambda_.1} parent=1 // pred_region
      _
    $region21: #{_lambda_.1} parent=1 // pred_fallthru
      _
    // Predicated region
    $region22: #{_lambda_.1} parent=1 // pred_check
      _
    $region23: #{_lambda_.1} parent=1 // pred_check_branch
      %47 = sbr.rel (0) target = $region25
    $region24: #{_lambda_.1} parent=1 // pred_region
      %49 = vsyncadd [#allocation5], 0
      %s50 = sshll.u32 %s5, 4
      %s51 = int_to_ptr.hbm [resolvable:$true] %s50
      %s52 = sshll.u32 [#allocation6], 4
      %s53 = int_to_ptr.vmem [resolvable:$true] %s52
      %58 = dma.hbm_to_vmem [thread:$0]  %s51, 1024, %s53, [#allocation5], 64, 64, 4
    $region25: #{_lambda_.1} parent=1 // pred_fallthru
      _
    // Predicated region
    $region26: #{_lambda_.1} parent=1 // pred_check
      _
    $region27: #{_lambda_.1} parent=1 // pred_check_branch
      %60 = sbr.rel (0) target = $region29
    $region28: #{_lambda_.1} parent=1 // pred_region
      _
    $region29: #{_lambda_.1} parent=1 // pred_fallthru
      _
    // Predicated region
    $region30: #{_lambda_.1} parent=1 // pred_check
      _
    $region31: #{_lambda_.1} parent=1 // pred_check_branch
      %62 = sbr.rel (0) target = $region33
    $region32: #{_lambda_.1} parent=1 // pred_region
      %64 = dma.done [#allocation3], 1024
    $region33: #{_lambda_.1} parent=1 // pred_fallthru
      _
    // Predicated region
    $region34: #{_lambda_.1} parent=1 // pred_check
      _
    $region35: #{_lambda_.1} parent=1 // pred_check_branch
      %66 = sbr.rel (0) target = $region37
    $region36: #{_lambda_.1} parent=1 // pred_region
      %68 = dma.done [#allocation5], 1024
    $region37: #{_lambda_.1} parent=1 // pred_fallthru
      _
    // Predicated region
    $region38: #{_lambda_.1} parent=1 // pred_check
      _
    $region39: #{_lambda_.1} parent=1 // pred_check_branch
      %70 = sbr.rel (0) target = $region41
    $region40: #{_lambda_.1} parent=1 // pred_region
      %72 = dma.done [#allocation5], 1024
    $region41: #{_lambda_.1} parent=1 // pred_fallthru
      _
    %v73 = vld [vmem:[%s0] sm:$0xf]
    %v74 = vld [vmem:[%s0 + $0x4] sm:$0xf]
    %v75 = vld [vmem:[#allocation2] sm:$0xf]
    %v76 = vld [vmem:[#allocation2 + $0x4] sm:$0xf]
    %v77 = vld [vmem:[#allocation2 + $0x8] sm:$0xf]
    %v78 = vld [vmem:[#allocation2 + $0xc] sm:$0xf]
    %v79 = vld [vmem:[#allocation2 + $0x10] sm:$0xf]
    %v80 = vld [vmem:[#allocation2 + $0x14] sm:$0xf]
    %v81 = vld [vmem:[#allocation2 + $0x18] sm:$0xf]
    %v82 = vld [vmem:[#allocation2 + $0x1c] sm:$0xf]
    %v83 = vld [vmem:[#allocation2 + $0x20] sm:$0xf]
    %v84 = vld [vmem:[#allocation2 + $0x24] sm:$0xf]
    %v85 = vld [vmem:[#allocation2 + $0x28] sm:$0xf]
    %v86 = vld [vmem:[#allocation2 + $0x2c] sm:$0xf]
    %v87 = vld [vmem:[#allocation2 + $0x30] sm:$0xf]
    %v88 = vld [vmem:[#allocation2 + $0x34] sm:$0xf]
    %v89 = vld [vmem:[#allocation2 + $0x38] sm:$0xf]
    %v90 = vld [vmem:[#allocation2 + $0x3c] sm:$0xf]
    %v91 = vld [vmem:[%s2] sm:$0x1]
    %v93 = vperm.slane %v91, 0
    %v97 = vunpack.c.l.b16 %v73
    %v98 = vunpack.c.l.b16 %v74
    %v99 = vpack.c.b16 %v98, %v97
    %v117 = vunpack.c.l.b16 %v75
    %v118 = vunpack.c.l.b16 %v76
    %v119 = vunpack.c.l.b16 %v77
    %v120 = vunpack.c.l.b16 %v78
    %v121 = vunpack.c.l.b16 %v79
    %v122 = vunpack.c.l.b16 %v80
    %v123 = vunpack.c.l.b16 %v81
    %v124 = vunpack.c.l.b16 %v82
    %v125 = vunpack.c.l.b16 %v83
    %v126 = vunpack.c.l.b16 %v84
    %v127 = vunpack.c.l.b16 %v85
    %v128 = vunpack.c.l.b16 %v86
    %v129 = vunpack.c.l.b16 %v87
    %v130 = vunpack.c.l.b16 %v88
    %v131 = vunpack.c.l.b16 %v89
    %v132 = vunpack.c.l.b16 %v90
    %v133 = vpack.c.b16 %v118, %v117
    %v134 = vpack.c.b16 %v120, %v119
    %v135 = vpack.c.b16 %v122, %v121
    %v136 = vpack.c.b16 %v124, %v123
    %v137 = vpack.c.b16 %v126, %v125
    %v138 = vpack.c.b16 %v128, %v127
    %v139 = vpack.c.b16 %v130, %v129
    %v140 = vpack.c.b16 %v132, %v131
    %149 = vmatpush.bf16.msra.mxu0 %v140
    %150 = vmatpush.bf16.msra.mxu0 %v139
    %151 = vmatpush.bf16.msra.mxu0 %v138
    %152 = vmatpush.bf16.msra.mxu0 %v137
    %153 = vmatpush.bf16.msra.mxu0 %v136
    %154 = vmatpush.bf16.msra.mxu0 %v135
    %155 = vmatpush.bf16.msra.mxu0 %v134
    %156 = vmatpush.bf16.msra.mxu0 %v133
    %157 = vmatmul.bf16.gmra.mxu0 %v99
    %v158 = vpop.f32.mrf.mxu0
    %v159 = vadd.f32 %v93, %v158
    %v160 = vpop.f32.mrf.mxu0
    %v161 = vadd.f32 %v93, %v160
    %162 = vdwg.mxu0
    %v163 = vpack.c.bf16 %v159, %v159
    %v164 = vpack.c.bf16 %v161, %v161
    %v165 = vunpack.c.l.bf16 %v163
    %v166 = vunpack.c.l.bf16 %v164
    %v167 = vmax.f32 %v165, 0.0
    %v168 = vmax.f32 %v166, 0.0
    %v169 = vpack.c.bf16 %v168, %v167
    %v170 = vld [vmem:[#allocation4] sm:$0xf]
    %v171 = vld [vmem:[#allocation4 + $0x4] sm:$0xf]
    %v172 = vld [vmem:[#allocation4 + $0x8] sm:$0xf]
    %v173 = vld [vmem:[#allocation4 + $0xc] sm:$0xf]
    %v174 = vld [vmem:[#allocation4 + $0x10] sm:$0xf]
    %v175 = vld [vmem:[#allocation4 + $0x14] sm:$0xf]
    %v176 = vld [vmem:[#allocation4 + $0x18] sm:$0xf]
    %v177 = vld [vmem:[#allocation4 + $0x1c] sm:$0xf]
    %v178 = vld [vmem:[#allocation4 + $0x20] sm:$0xf]
    %v179 = vld [vmem:[#allocation4 + $0x24] sm:$0xf]
    %v180 = vld [vmem:[#allocation4 + $0x28] sm:$0xf]
    %v181 = vld [vmem:[#allocation4 + $0x2c] sm:$0xf]
    %v182 = vld [vmem:[#allocation4 + $0x30] sm:$0xf]
    %v183 = vld [vmem:[#allocation4 + $0x34] sm:$0xf]
    %v184 = vld [vmem:[#allocation4 + $0x38] sm:$0xf]
    %v185 = vld [vmem:[#allocation4 + $0x3c] sm:$0xf]
    %v186 = vld [vmem:[%s4] sm:$0x1]
    %v188 = vperm.slane %v186, 0
    %v206 = vunpack.c.l.b16 %v170
    %v207 = vunpack.c.l.b16 %v171
    %v208 = vunpack.c.l.b16 %v172
    %v209 = vunpack.c.l.b16 %v173
    %v210 = vunpack.c.l.b16 %v174
    %v211 = vunpack.c.l.b16 %v175
    %v212 = vunpack.c.l.b16 %v176
    %v213 = vunpack.c.l.b16 %v177
    %v214 = vunpack.c.l.b16 %v178
    %v215 = vunpack.c.l.b16 %v179
    %v216 = vunpack.c.l.b16 %v180
    %v217 = vunpack.c.l.b16 %v181
    %v218 = vunpack.c.l.b16 %v182
    %v219 = vunpack.c.l.b16 %v183
    %v220 = vunpack.c.l.b16 %v184
    %v221 = vunpack.c.l.b16 %v185
    %v222 = vpack.c.b16 %v207, %v206
    %v223 = vpack.c.b16 %v209, %v208
    %v224 = vpack.c.b16 %v211, %v210
    %v225 = vpack.c.b16 %v213, %v212
    %v226 = vpack.c.b16 %v215, %v214
    %v227 = vpack.c.b16 %v217, %v216
    %v228 = vpack.c.b16 %v219, %v218
    %v229 = vpack.c.b16 %v221, %v220
    %238 = vmatpush.bf16.msra.mxu0 %v229
    %239 = vmatpush.bf16.msra.mxu0 %v228
    %240 = vmatpush.bf16.msra.mxu0 %v227
    %241 = vmatpush.bf16.msra.mxu0 %v226
    %242 = vmatpush.bf16.msra.mxu0 %v225
    %243 = vmatpush.bf16.msra.mxu0 %v224
    %244 = vmatpush.bf16.msra.mxu0 %v223
    %245 = vmatpush.bf16.msra.mxu0 %v222
    %246 = vmatmul.bf16.gmra.mxu0 %v169
    %v247 = vpop.f32.mrf.mxu0
    %v248 = vadd.f32 %v188, %v247
    %v249 = vpop.f32.mrf.mxu0
    %v250 = vadd.f32 %v188, %v249
    %251 = vdwg.mxu0
    %v252 = vpack.c.bf16 %v248, %v248
    %v253 = vpack.c.bf16 %v250, %v250
    %v254 = vunpack.c.l.bf16 %v252
    %v255 = vunpack.c.l.bf16 %v253
    %v256 = vmax.f32 %v254, 0.0
    %v257 = vmax.f32 %v255, 0.0
    %v258 = vpack.c.bf16 %v257, %v256
    %v259 = vld [vmem:[#allocation6] sm:$0xf]
    %v260 = vld [vmem:[#allocation6 + $0x4] sm:$0xf]
    %v261 = vld [vmem:[#allocation6 + $0x8] sm:$0xf]
    %v262 = vld [vmem:[#allocation6 + $0xc] sm:$0xf]
    %v263 = vld [vmem:[#allocation6 + $0x10] sm:$0xf]
    %v264 = vld [vmem:[#allocation6 + $0x14] sm:$0xf]
    %v265 = vld [vmem:[#allocation6 + $0x18] sm:$0xf]
    %v266 = vld [vmem:[#allocation6 + $0x1c] sm:$0xf]
    %v267 = vld [vmem:[#allocation6 + $0x20] sm:$0xf]
    %v268 = vld [vmem:[#allocation6 + $0x24] sm:$0xf]
    %v269 = vld [vmem:[#allocation6 + $0x28] sm:$0xf]
    %v270 = vld [vmem:[#allocation6 + $0x2c] sm:$0xf]
    %v271 = vld [vmem:[#allocation6 + $0x30] sm:$0xf]
    %v272 = vld [vmem:[#allocation6 + $0x34] sm:$0xf]
    %v273 = vld [vmem:[#allocation6 + $0x38] sm:$0xf]
    %v274 = vld [vmem:[#allocation6 + $0x3c] sm:$0xf]
    %v275 = vld [vmem:[%s6] sm:$0x1]
    %v277 = vperm.slane %v275, 0
    %v295 = vunpack.c.l.b16 %v259
    %v296 = vunpack.c.l.b16 %v260
    %v297 = vunpack.c.l.b16 %v261
    %v298 = vunpack.c.l.b16 %v262
    %v299 = vunpack.c.l.b16 %v263
    %v300 = vunpack.c.l.b16 %v264
    %v301 = vunpack.c.l.b16 %v265
    %v302 = vunpack.c.l.b16 %v266
    %v303 = vunpack.c.l.b16 %v267
    %v304 = vunpack.c.l.b16 %v268
    %v305 = vunpack.c.l.b16 %v269
    %v306 = vunpack.c.l.b16 %v270
    %v307 = vunpack.c.l.b16 %v271
    %v308 = vunpack.c.l.b16 %v272
    %v309 = vunpack.c.l.b16 %v273
    %v310 = vunpack.c.l.b16 %v274
    %v311 = vpack.c.b16 %v296, %v295
    %v312 = vpack.c.b16 %v298, %v297
    %v313 = vpack.c.b16 %v300, %v299
    %v314 = vpack.c.b16 %v302, %v301
    %v315 = vpack.c.b16 %v304, %v303
    %v316 = vpack.c.b16 %v306, %v305
    %v317 = vpack.c.b16 %v308, %v307
    %v318 = vpack.c.b16 %v310, %v309
    %327 = vmatpush.bf16.msra.mxu0 %v318
    %328 = vmatpush.bf16.msra.mxu0 %v317
    %329 = vmatpush.bf16.msra.mxu0 %v316
    %330 = vmatpush.bf16.msra.mxu0 %v315
    %331 = vmatpush.bf16.msra.mxu0 %v314
    %332 = vmatpush.bf16.msra.mxu0 %v313
    %333 = vmatpush.bf16.msra.mxu0 %v312
    %334 = vmatpush.bf16.msra.mxu0 %v311
    %335 = vmatmul.bf16.gmra.mxu0 %v258
    %v336 = vpop.f32.mrf.mxu0
    %v337 = vadd.f32 %v277, %v336
    %v338 = vpop.f32.mrf.mxu0
    %v339 = vadd.f32 %v277, %v338
    %340 = vdwg.mxu0
    %341 = vst [vmem:[%s7] sm:$0xff] %v337
    %342 = vst [vmem:[%s7 + $0x8] sm:$0xff] %v339
    // Predicated region
    $region42: #{_lambda_.1} parent=1 // pred_check
      _
    $region43: #{_lambda_.1} parent=1 // pred_check_branch
      %344 = sbr.rel (0) target = $region45
    $region44: #{_lambda_.1} parent=1 // pred_region
      _
    $region45: #{_lambda_.1} parent=1 // pred_fallthru
      _
    // Predicated region
    $region46: #{_lambda_.1} parent=1 // pred_check
      _
    $region47: #{_lambda_.1} parent=1 // pred_check_branch
      %346 = sbr.rel (0) target = $region49
    $region48: #{_lambda_.1} parent=1 // pred_region
      _
    $region49: #{_lambda_.1} parent=1 // pred_fallthru
      _
    %347 = vsyncpa [#allocation3], 1
    %348 = vsyncpa [#allocation5], 1

</llo_original>
